<compile_context>
chip_gen: v6e
topology: v6e:2x2x1
jax: 0.10.0
libtpu: 0.0.40
codegen_flags: <defaults>
</compile_context>

<pallas_src>
import functools

import jax
import jax.numpy as jnp
from jax.experimental import pallas as pl
from jax.experimental.pallas import tpu as pltpu


# ----------------------------------------------------------------------------
# Pallas kernel: one batch element per grid step.
# ----------------------------------------------------------------------------
def _cpn_kernel(cf_ref, vt_ref, vr_ref, out_ref, cmatch_ref,
                *, C, R, HW, normalize):
    # cf_ref    : (1, C, f*HW)   features in native layout/dtype; frame r is
    #                            the lane slice [r*HW : (r+1)*HW]
    # vt_ref    : (1, 1, HW)     resized+thresholded target mask (bf16 0/1)
    # vr_ref    : (1, R, HW)     resized+thresholded aligned ref masks (bf16)
    # out_ref   : (1, 2C+1, HW)  cat([c_feats[:,:,0], c_out, c_mask], ch dim)
    # cmatch_ref: (1, R, HW)     c_match[:, 0] (channel-constant), bf16
    vt = vt_ref[0].astype(jnp.float32)                 # (1, HW)
    vr = vr_ref[0].astype(jnp.float32)                 # (R, HW)
    feat0 = cf_ref[0, :, 0:HW].astype(jnp.float32)     # (C, HW)

    # Stage 1: per-reference global similarity, fused to scalars.
    #   gs_r = sum_hw (vt*vr_r) * sum_c feat0*feat_r / (sum(vt*vr_r) * C)
    gs_rows = []
    for r in range(R):
        fr = cf_ref[0, :, (r + 1) * HW:(r + 2) * HW].astype(jnp.float32)
        d_r = jnp.sum(feat0 * fr, axis=0, keepdims=True)            # (1, HW)
        vmap_r = vt * vr[r:r + 1, :]                                # (1, HW)
        v_sum = jnp.sum(vmap_r, axis=-1, keepdims=True)             # (1, 1)
        gs_num = jnp.sum(vmap_r * d_r, axis=-1, keepdims=True)      # (1, 1)
        is_zero = v_sum < 1e-4
        if normalize:
            gs_r = gs_num / ((v_sum + is_zero.astype(jnp.float32))
                             * jnp.float32(C))
        else:
            gs_r = gs_num
        gs_rows.append(jnp.where(is_zero, jnp.float32(0.0), gs_r))  # (1, 1)
    gs = gs_rows[0] if R == 1 else jnp.concatenate(gs_rows, axis=0)  # (R, 1)

    # Stage 2: masked softmax over the reference axis (cheap (R,HW) region,
    # kept numerically identical to the PyTorch reference).
    masked = gs * vr                                                 # (R, HW)
    max_vec = jnp.max(masked, axis=0, keepdims=True)                 # (1, HW)
    mexp = jnp.exp(masked - max_vec) * vr                            # (R, HW)
    msum = jnp.sum(mexp, axis=0, keepdims=True)                      # (1, HW)
    msum = msum + (msum < 1e-4).astype(jnp.float32)
    cmatch = mexp * (1.0 / msum)          # one (1,HW) divide, then multiplies

    # Stage 3: weighted feature sum and context mask.
    # NOTE: for bf16 feature inputs each frame is cast twice (here and in
    # stage 1); on v7x this could be trimmed by a bf16 multiply + f32
    # accumulate, kept simple here (f32 inputs: the cast is a no-op).
    acc = cf_ref[0, :, HW:2 * HW].astype(jnp.float32) * cmatch[0:1, :]
    for r in range(1, R):
        fr = cf_ref[0, :, (r + 1) * HW:(r + 2) * HW].astype(jnp.float32)
        acc = acc + fr * cmatch[r:r + 1, :]
    c_mask = 1.0 - jnp.sum(cmatch * vr, axis=0, keepdims=True)       # (1, HW)

    out_ref[0, 0:C, :] = feat0.astype(out_ref.dtype)
    out_ref[0, C:2 * C, :] = acc.astype(out_ref.dtype)
    out_ref[0, 2 * C:2 * C + 1, :] = c_mask.astype(out_ref.dtype)
    cmatch_ref[0] = cmatch.astype(cmatch_ref.dtype)


# ----------------------------------------------------------------------------
# Glue (plain JAX)
# ----------------------------------------------------------------------------
def _resize_bilinear(x, hw):
    # matches F.interpolate(..., mode='bilinear', align_corners=False)
    out_shape = x.shape[:-2] + tuple(hw)
    return jax.image.resize(x, out_shape, method="linear", antialias=False)


def _add_match_border(v_t, c_match0, f):
    # v_t: (b,1,H,W), c_match0 == c_match[:, 0]: (b, f-1, h, w)
    # TODO(synk): utils.transforms.ImageTransforms.dilatate (cv2-based) is
    # approximated as a 3x3 max filter (dilation of a binary mask, 1 iter).
    b, _, H, W = v_t.shape
    R = c_match0.shape[1]
    inv = 1.0 - v_t
    dil = jax.lax.reduce_window(inv, -jnp.inf, jax.lax.max,
                                (1, 1, 3, 3), (1, 1, 1, 1), "SAME")
    v_t_border = ((dil - inv) > 0).astype(jnp.float32)            # (b,1,H,W)

    ref_imp = _resize_bilinear(c_match0, (H, W))                  # (b,R,H,W)
    ref_imp = jnp.concatenate(
        [ref_imp[:, : R // 2],
         jnp.zeros((b, 1, H, W), jnp.float32),
         ref_imp[:, R // 2:]], axis=1)                            # (b,f,H,W)
    ref_imp = jnp.broadcast_to(ref_imp[:, None], (b, 3, f, H, W))

    border = v_t_border[:, :, None]                               # (b,1,1,H,W)
    b1 = ref_imp * (1.0 - border)
    red = jnp.array([1.0, 0.0, 0.0], jnp.float32).reshape(1, 3, 1, 1, 1)
    b2 = jnp.broadcast_to(border, (b, 3, f, H, W)) * red
    return b1 + b2


def cpn_context_matching(c_feats, v_t, v_aligned, normalize=True,
                         out_dtype=None):
    b, c_c, f, h, w = c_feats.shape
    R = f - 1
    hw = h * w
    out_dtype = (jnp.dtype(c_feats.dtype) if out_dtype is None
                 else jnp.dtype(out_dtype))

    # Mask resizing + thresholding (glue).  Masks are exact 0/1 -> bf16 is
    # lossless and halves their HBM read.
    v_t_resized = (_resize_bilinear(v_t.astype(jnp.float32), (h, w)) > 0.5
                   ).astype(jnp.bfloat16)
    v_r = (_resize_bilinear(v_aligned.astype(jnp.float32), (h, w)) > 0.5
           ).astype(jnp.bfloat16)
    v_r = v_r[:, 0]                                   # (b, R, h, w)

    # Native layout, native dtype: a *free* reshape, no HBM transpose pass.
    cf_flat = c_feats.reshape(b, c_c, f * hw)
    vt_flat = v_t_resized.reshape(b, 1, hw)
    vr_flat = v_r.reshape(b, R, hw)

    # --- VMEM budgeting (per-generation, with headroom) ---------------------
    feat_itemsize = jnp.dtype(c_feats.dtype).itemsize
    cf_block = c_c * f * hw * feat_itemsize
    mask_block = (1 + R) * hw * 2
    out_block = (2 * c_c + 1) * hw * out_dtype.itemsize + R * hw * 2
    block_bytes = cf_block + mask_block + out_block
    try:
        vmem_cap = int(pltpu.get_tpu_info().vmem_capacity_bytes)
    except Exception:  # pragma: no cover - conservative fallback
        vmem_cap = 64 << 20
    # Inputs/outputs are double-buffered by default: ~2x blocks + headroom,
    # never more than ~75% of physical VMEM.
    vmem_limit = max(16 << 20,
                     min(int(2.5 * block_bytes) + (4 << 20),
                         (vmem_cap * 3) // 4))

    # Large feature maps (e.g. v7x's 64 MiB VMEM): single-buffer the dominant
    # feature slab instead of spilling / failing to compile.
    if 2 * cf_block > (2 * vmem_cap) // 5:
        cf_spec = pl.BlockSpec((1, c_c, f * hw), lambda i: (i, 0, 0),
                               pipeline_mode=pl.Buffered(1))
    else:
        cf_spec = pl.BlockSpec((1, c_c, f * hw), lambda i: (i, 0, 0))

    cost = pl.CostEstimate(
        flops=int(b * (4 * R * c_c * hw + 8 * R * hw)),
        transcendentals=int(b * R * hw),
        bytes_accessed=int(b * block_bytes),
    )

    # TODO(synk): for b == 1 on v7x (2 TensorCores) one core idles; a second
    # parallel grid axis over HW/C chunks would recover it.
    kernel = functools.partial(_cpn_kernel, C=c_c, R=R, HW=hw,
                               normalize=normalize)
    out_flat, cmatch_flat = pl.pallas_call(
        kernel,
        out_shape=(
            jax.ShapeDtypeStruct((b, 2 * c_c + 1, hw), out_dtype),
            jax.ShapeDtypeStruct((b, R, hw), jnp.bfloat16),
        ),
        grid=(b,),
        in_specs=[
            cf_spec,
            pl.BlockSpec((1, 1, hw), lambda i: (i, 0, 0)),
            pl.BlockSpec((1, R, hw), lambda i: (i, 0, 0)),
        ],
        out_specs=(
            pl.BlockSpec((1, 2 * c_c + 1, hw), lambda i: (i, 0, 0)),
            pl.BlockSpec((1, R, hw), lambda i: (i, 0, 0)),
        ),
        compiler_params=pltpu.CompilerParams(
            dimension_semantics=("parallel",),
            vmem_limit_bytes=vmem_limit),
        cost_estimate=cost,
    )(cf_flat, vt_flat, vr_flat)

    out = out_flat.reshape(b, 2 * c_c + 1, h, w)
    c_mask = out[:, 2 * c_c:2 * c_c + 1]              # (b, 1, h, w)
    c_match0 = cmatch_flat.astype(jnp.float32).reshape(b, R, h, w)

    ref_importance = _add_match_border(v_t.astype(jnp.float32), c_match0, f)
    return out, c_mask, ref_importance


# ----------------------------------------------------------------------------
# Pure-JAX reference (mirrors the PyTorch module) for a correctness check.
# ----------------------------------------------------------------------------
def _reference_forward(c_feats, v_t, v_aligned, normalize=True):
    b, c_c, f, h, w = c_feats.shape
    c_feats = c_feats.astype(jnp.float32)
    v_t_res = (_resize_bilinear(v_t, (h, w)) > 0.5).astype(jnp.float32)
    cos_sim, vr_map = [], []
    for r in range(f - 1):
        v_r = (_resize_bilinear(v_aligned[:, :, r], (h, w)) > 0.5
               ).astype(jnp.float32)
        vr_map.append(v_r)
        vmap = v_t_res * v_r
        v_sum = vmap[:, 0].sum(axis=(-2, -1))
        v_sum_zeros = v_sum < 1e-4
        v_sum = v_sum + v_sum_zeros.astype(jnp.float32)
        gs_norm = v_sum * c_c if normalize else jnp.float32(1.0)
        gs = (vmap * c_feats[:, :, 0] * c_feats[:, :, r + 1]
              ).sum(axis=(-3, -2, -1)) / gs_norm
        gs = jnp.where(v_sum_zeros, 0.0, gs)
        cos_sim.append(jnp.ones((b, c_c, h, w), jnp.float32)
                       * gs.reshape(b, 1, 1, 1))
    cos_sim = jnp.stack(cos_sim, axis=2)              # (b, c_c, R, h, w)
    vr_map = jnp.stack(vr_map, axis=2)                # (b, 1,   R, h, w)

    masked = cos_sim * vr_map
    max_vec = jnp.max(masked, axis=2, keepdims=True)
    exps = jnp.exp(masked - max_vec)
    mexps = exps * vr_map
    msums = mexps.sum(axis=2, keepdims=True)
    msums = msums + (msums < 1e-4).astype(jnp.float32)
    c_match = mexps / msums

    c_out = jnp.sum(c_feats[:, :, 1:] * c_match, axis=2)
    c_mask = jnp.sum(c_match * vr_map, axis=2)
    c_mask = 1.0 - jnp.mean(c_mask, axis=1, keepdims=True)
    out = jnp.concatenate([c_feats[:, :, 0], c_out, c_mask], axis=1)
    return out, c_mask


# ----------------------------------------------------------------------------
if __name__ == "__main__":
    key = jax.random.PRNGKey(0)
    b, c_c, f, h, w = 2, 8, 4, 16, 16     # f-1 = 3 reference frames
    H, W = 32, 32                         # mask resolution (resized to h, w)

    k1, k2, k3 = jax.random.split(key, 3)
    c_feats = jax.random.normal(k1, (b, c_c, f, h, w), jnp.float32)
    v_t = (jax.random.uniform(k2, (b, 1, H, W)) > 0.5).astype(jnp.float32)
    v_aligned = (jax.random.uniform(k3, (b, 1, f - 1, H, W)) > 0.5).astype(
        jnp.float32)

    out, c_mask, ref_importance = cpn_context_matching(
        c_feats, v_t, v_aligned, normalize=True)
    jax.block_until_ready((out, c_mask, ref_importance))

    assert out.shape == (b, 2 * c_c + 1, h, w)
    assert c_mask.shape == (b, 1, h, w)
    assert ref_importance.shape == (b, 3, f, H, W)

    out_ref, c_mask_ref = _reference_forward(c_feats, v_t, v_aligned, True)
    assert bool(jnp.allclose(out, out_ref, rtol=1e-3, atol=1e-3))
    assert bool(jnp.allclose(c_mask, c_mask_ref, rtol=1e-3, atol=1e-3))

    print("KERNEL_OK")
</pallas_src>

<mosaic_0001>
module attributes {stable_mosaic.version = 11 : i64} {
  func.func @_cpn_kernel(%arg0: i32, %arg1: memref<1x8x1024xf32, #tpu.memory_space<vmem>>, %arg2: memref<1x1x256xbf16, #tpu.memory_space<vmem>>, %arg3: memref<1x3x256xbf16, #tpu.memory_space<vmem>>, %arg4: memref<1x17x256xf32, #tpu.memory_space<vmem>>, %arg5: memref<1x3x256xbf16, #tpu.memory_space<vmem>>) attributes {dimension_semantics = [#tpu.dimension_semantics<parallel>], iteration_bounds = array<i64: 2>, scalar_prefetch = 0 : i64, scratch_operands = 0 : i64, tpu.core_type = #tpu.core_type<tc>, window_params = [{transform_indices = @transform_0, window_bounds = array<i64: 1, 8, 1024>}, {transform_indices = @transform_1, window_bounds = array<i64: 1, 1, 256>}, {transform_indices = @transform_2, window_bounds = array<i64: 1, 3, 256>}, {transform_indices = @transform_3, window_bounds = array<i64: 1, 17, 256>}, {transform_indices = @transform_4, window_bounds = array<i64: 1, 3, 256>}]} {
    %c0 = arith.constant 0 : index
    %c0_0 = arith.constant 0 : index
    %c0_1 = arith.constant 0 : index
    %0 = vector.load %arg2[%c0, %c0_0, %c0_1] : memref<1x1x256xbf16, #tpu.memory_space<vmem>>, vector<1x1x256xbf16>
    %1 = vector.shape_cast %0 : vector<1x1x256xbf16> to vector<1x256xbf16>
    %2 = arith.extf %1 : vector<1x256xbf16> to vector<1x256xf32>
    %c0_2 = arith.constant 0 : index
    %c0_3 = arith.constant 0 : index
    %c0_4 = arith.constant 0 : index
    %3 = vector.load %arg3[%c0_2, %c0_3, %c0_4] : memref<1x3x256xbf16, #tpu.memory_space<vmem>>, vector<1x3x256xbf16>
    %4 = vector.shape_cast %3 : vector<1x3x256xbf16> to vector<3x256xbf16>
    %5 = arith.extf %4 : vector<3x256xbf16> to vector<3x256xf32>
    %c0_5 = arith.constant 0 : index
    %c0_6 = arith.constant 0 : index
    %c0_7 = arith.constant 0 : index
    %6 = vector.load %arg1[%c0_5, %c0_6, %c0_7] : memref<1x8x1024xf32, #tpu.memory_space<vmem>>, vector<1x8x256xf32>
    %7 = vector.shape_cast %6 : vector<1x8x256xf32> to vector<8x256xf32>
    %c0_8 = arith.constant 0 : index
    %c0_9 = arith.constant 0 : index
    %c256 = arith.constant 256 : index
    %8 = vector.load %arg1[%c0_8, %c0_9, %c256] : memref<1x8x1024xf32, #tpu.memory_space<vmem>>, vector<1x8x256xf32>
    %9 = vector.shape_cast %8 : vector<1x8x256xf32> to vector<8x256xf32>
    %10 = arith.mulf %7, %9 : vector<8x256xf32>
    %cst = arith.constant dense<0.000000e+00> : vector<256xf32>
    %11 = vector.multi_reduction <add>, %10, %cst [0] : vector<8x256xf32> to vector<256xf32>
    %12 = vector.shape_cast %11 : vector<256xf32> to vector<1x256xf32>
    %13 = vector.extract_strided_slice %5 {offsets = [0, 0], sizes = [1, 256], strides = [1, 1]} : vector<3x256xf32> to vector<1x256xf32>
    %14 = arith.mulf %2, %13 : vector<1x256xf32>
    %cst_10 = arith.constant dense<0.000000e+00> : vector<1xf32>
    %15 = vector.multi_reduction <add>, %14, %cst_10 [1] : vector<1x256xf32> to vector<1xf32>
    %16 = vector.shape_cast %15 : vector<1xf32> to vector<1x1xf32>
    %17 = arith.mulf %14, %12 : vector<1x256xf32>
    %cst_11 = arith.constant dense<0.000000e+00> : vector<1xf32>
    %18 = vector.multi_reduction <add>, %17, %cst_11 [1] : vector<1x256xf32> to vector<1xf32>
    %19 = vector.shape_cast %18 : vector<1xf32> to vector<1x1xf32>
    %cst_12 = arith.constant 9.99999974E-5 : f32
    %20 = vector.broadcast %cst_12 : f32 to vector<1x1xf32>
    %21 = arith.cmpf olt, %16, %20 : vector<1x1xf32>
    %22 = arith.extui %21 : vector<1x1xi1> to vector<1x1xi32>
    %23 = arith.sitofp %22 : vector<1x1xi32> to vector<1x1xf32>
    %24 = arith.addf %16, %23 : vector<1x1xf32>
    %cst_13 = arith.constant 8.000000e+00 : f32
    %25 = vector.broadcast %cst_13 : f32 to vector<1x1xf32>
    %26 = arith.mulf %24, %25 : vector<1x1xf32>
    %27 = arith.divf %19, %26 : vector<1x1xf32>
    %cst_14 = arith.constant 0.000000e+00 : f32
    %28 = vector.broadcast %cst_14 : f32 to vector<1x1xf32>
    %29 = arith.select %21, %28, %27 : vector<1x1xi1>, vector<1x1xf32>
    %c0_15 = arith.constant 0 : index
    %c0_16 = arith.constant 0 : index
    %c512 = arith.constant 512 : index
    %30 = vector.load %arg1[%c0_15, %c0_16, %c512] : memref<1x8x1024xf32, #tpu.memory_space<vmem>>, vector<1x8x256xf32>
    %31 = vector.shape_cast %30 : vector<1x8x256xf32> to vector<8x256xf32>
    %32 = arith.mulf %7, %31 : vector<8x256xf32>
    %cst_17 = arith.constant dense<0.000000e+00> : vector<256xf32>
    %33 = vector.multi_reduction <add>, %32, %cst_17 [0] : vector<8x256xf32> to vector<256xf32>
    %34 = vector.shape_cast %33 : vector<256xf32> to vector<1x256xf32>
    %35 = vector.extract_strided_slice %5 {offsets = [1, 0], sizes = [1, 256], strides = [1, 1]} : vector<3x256xf32> to vector<1x256xf32>
    %36 = arith.mulf %2, %35 : vector<1x256xf32>
    %cst_18 = arith.constant dense<0.000000e+00> : vector<1xf32>
    %37 = vector.multi_reduction <add>, %36, %cst_18 [1] : vector<1x256xf32> to vector<1xf32>
    %38 = vector.shape_cast %37 : vector<1xf32> to vector<1x1xf32>
    %39 = arith.mulf %36, %34 : vector<1x256xf32>
    %cst_19 = arith.constant dense<0.000000e+00> : vector<1xf32>
    %40 = vector.multi_reduction <add>, %39, %cst_19 [1] : vector<1x256xf32> to vector<1xf32>
    %41 = vector.shape_cast %40 : vector<1xf32> to vector<1x1xf32>
    %cst_20 = arith.constant 9.99999974E-5 : f32
    %42 = vector.broadcast %cst_20 : f32 to vector<1x1xf32>
    %43 = arith.cmpf olt, %38, %42 : vector<1x1xf32>
    %44 = arith.extui %43 : vector<1x1xi1> to vector<1x1xi32>
    %45 = arith.sitofp %44 : vector<1x1xi32> to vector<1x1xf32>
    %46 = arith.addf %38, %45 : vector<1x1xf32>
    %cst_21 = arith.constant 8.000000e+00 : f32
    %47 = vector.broadcast %cst_21 : f32 to vector<1x1xf32>
    %48 = arith.mulf %46, %47 : vector<1x1xf32>
    %49 = arith.divf %41, %48 : vector<1x1xf32>
    %cst_22 = arith.constant 0.000000e+00 : f32
    %50 = vector.broadcast %cst_22 : f32 to vector<1x1xf32>
    %51 = arith.select %43, %50, %49 : vector<1x1xi1>, vector<1x1xf32>
    %c0_23 = arith.constant 0 : index
    %c0_24 = arith.constant 0 : index
    %c768 = arith.constant 768 : index
    %52 = vector.load %arg1[%c0_23, %c0_24, %c768] : memref<1x8x1024xf32, #tpu.memory_space<vmem>>, vector<1x8x256xf32>
    %53 = vector.shape_cast %52 : vector<1x8x256xf32> to vector<8x256xf32>
    %54 = arith.mulf %7, %53 : vector<8x256xf32>
    %cst_25 = arith.constant dense<0.000000e+00> : vector<256xf32>
    %55 = vector.multi_reduction <add>, %54, %cst_25 [0] : vector<8x256xf32> to vector<256xf32>
    %56 = vector.shape_cast %55 : vector<256xf32> to vector<1x256xf32>
    %57 = vector.extract_strided_slice %5 {offsets = [2, 0], sizes = [1, 256], strides = [1, 1]} : vector<3x256xf32> to vector<1x256xf32>
    %58 = arith.mulf %2, %57 : vector<1x256xf32>
    %cst_26 = arith.constant dense<0.000000e+00> : vector<1xf32>
    %59 = vector.multi_reduction <add>, %58, %cst_26 [1] : vector<1x256xf32> to vector<1xf32>
    %60 = vector.shape_cast %59 : vector<1xf32> to vector<1x1xf32>
    %61 = arith.mulf %58, %56 : vector<1x256xf32>
    %cst_27 = arith.constant dense<0.000000e+00> : vector<1xf32>
    %62 = vector.multi_reduction <add>, %61, %cst_27 [1] : vector<1x256xf32> to vector<1xf32>
    %63 = vector.shape_cast %62 : vector<1xf32> to vector<1x1xf32>
    %cst_28 = arith.constant 9.99999974E-5 : f32
    %64 = vector.broadcast %cst_28 : f32 to vector<1x1xf32>
    %65 = arith.cmpf olt, %60, %64 : vector<1x1xf32>
    %66 = arith.extui %65 : vector<1x1xi1> to vector<1x1xi32>
    %67 = arith.sitofp %66 : vector<1x1xi32> to vector<1x1xf32>
    %68 = arith.addf %60, %67 : vector<1x1xf32>
    %cst_29 = arith.constant 8.000000e+00 : f32
    %69 = vector.broadcast %cst_29 : f32 to vector<1x1xf32>
    %70 = arith.mulf %68, %69 : vector<1x1xf32>
    %71 = arith.divf %63, %70 : vector<1x1xf32>
    %cst_30 = arith.constant 0.000000e+00 : f32
    %72 = vector.broadcast %cst_30 : f32 to vector<1x1xf32>
    %73 = arith.select %65, %72, %71 : vector<1x1xi1>, vector<1x1xf32>
    %74 = tpu.concatenate %29, %51, %73 in 0 : vector<1x1xf32>, vector<1x1xf32>, vector<1x1xf32> -> vector<3x1xf32>
    %75 = vector.broadcast %74 : vector<3x1xf32> to vector<3x256xf32>
    %76 = arith.mulf %75, %5 : vector<3x256xf32>
    %cst_31 = arith.constant dense<0xFF800000> : vector<256xf32>
    %77 = vector.multi_reduction <maximumf>, %76, %cst_31 [0] : vector<3x256xf32> to vector<256xf32>
    %78 = vector.shape_cast %77 : vector<256xf32> to vector<1x256xf32>
    %79 = vector.broadcast %78 : vector<1x256xf32> to vector<3x256xf32>
    %80 = arith.subf %76, %79 : vector<3x256xf32>
    %81 = math.exp %80 : vector<3x256xf32>
    %82 = arith.mulf %81, %5 : vector<3x256xf32>
    %cst_32 = arith.constant dense<0.000000e+00> : vector<256xf32>
    %83 = vector.multi_reduction <add>, %82, %cst_32 [0] : vector<3x256xf32> to vector<256xf32>
    %84 = vector.shape_cast %83 : vector<256xf32> to vector<1x256xf32>
    %cst_33 = arith.constant 9.99999974E-5 : f32
    %85 = vector.broadcast %cst_33 : f32 to vector<1x256xf32>
    %86 = arith.cmpf olt, %84, %85 : vector<1x256xf32>
    %87 = arith.extui %86 : vector<1x256xi1> to vector<1x256xi32>
    %88 = arith.sitofp %87 : vector<1x256xi32> to vector<1x256xf32>
    %89 = arith.addf %84, %88 : vector<1x256xf32>
    %cst_34 = arith.constant 1.000000e+00 : f32
    %90 = vector.broadcast %cst_34 : f32 to vector<1x256xf32>
    %91 = arith.divf %90, %89 : vector<1x256xf32>
    %92 = vector.broadcast %91 : vector<1x256xf32> to vector<3x256xf32>
    %93 = arith.mulf %82, %92 : vector<3x256xf32>
    %c0_35 = arith.constant 0 : index
    %c0_36 = arith.constant 0 : index
    %c256_37 = arith.constant 256 : index
    %94 = vector.load %arg1[%c0_35, %c0_36, %c256_37] : memref<1x8x1024xf32, #tpu.memory_space<vmem>>, vector<1x8x256xf32>
    %95 = vector.shape_cast %94 : vector<1x8x256xf32> to vector<8x256xf32>
    %96 = vector.extract_strided_slice %93 {offsets = [0, 0], sizes = [1, 256], strides = [1, 1]} : vector<3x256xf32> to vector<1x256xf32>
    %97 = vector.broadcast %96 : vector<1x256xf32> to vector<8x256xf32>
    %98 = arith.mulf %95, %97 : vector<8x256xf32>
    %c0_38 = arith.constant 0 : index
    %c0_39 = arith.constant 0 : index
    %c512_40 = arith.constant 512 : index
    %99 = vector.load %arg1[%c0_38, %c0_39, %c512_40] : memref<1x8x1024xf32, #tpu.memory_space<vmem>>, vector<1x8x256xf32>
    %100 = vector.shape_cast %99 : vector<1x8x256xf32> to vector<8x256xf32>
    %101 = vector.extract_strided_slice %93 {offsets = [1, 0], sizes = [1, 256], strides = [1, 1]} : vector<3x256xf32> to vector<1x256xf32>
    %102 = vector.broadcast %101 : vector<1x256xf32> to vector<8x256xf32>
    %103 = arith.mulf %100, %102 : vector<8x256xf32>
    %104 = arith.addf %98, %103 : vector<8x256xf32>
    %c0_41 = arith.constant 0 : index
    %c0_42 = arith.constant 0 : index
    %c768_43 = arith.constant 768 : index
    %105 = vector.load %arg1[%c0_41, %c0_42, %c768_43] : memref<1x8x1024xf32, #tpu.memory_space<vmem>>, vector<1x8x256xf32>
    %106 = vector.shape_cast %105 : vector<1x8x256xf32> to vector<8x256xf32>
    %107 = vector.extract_strided_slice %93 {offsets = [2, 0], sizes = [1, 256], strides = [1, 1]} : vector<3x256xf32> to vector<1x256xf32>
    %108 = vector.broadcast %107 : vector<1x256xf32> to vector<8x256xf32>
    %109 = arith.mulf %106, %108 : vector<8x256xf32>
    %110 = arith.addf %104, %109 : vector<8x256xf32>
    %111 = arith.mulf %93, %5 : vector<3x256xf32>
    %cst_44 = arith.constant dense<0.000000e+00> : vector<256xf32>
    %112 = vector.multi_reduction <add>, %111, %cst_44 [0] : vector<3x256xf32> to vector<256xf32>
    %113 = vector.shape_cast %112 : vector<256xf32> to vector<1x256xf32>
    %cst_45 = arith.constant 1.000000e+00 : f32
    %114 = vector.broadcast %cst_45 : f32 to vector<1x256xf32>
    %115 = arith.subf %114, %113 : vector<1x256xf32>
    %c0_46 = arith.constant 0 : index
    %c0_47 = arith.constant 0 : index
    %c0_48 = arith.constant 0 : index
    %116 = vector.load %arg4[%c0_46, %c0_47, %c0_48] : memref<1x17x256xf32, #tpu.memory_space<vmem>>, vector<1x8x256xf32>
    %117 = vector.shape_cast %116 : vector<1x8x256xf32> to vector<8x256xf32>
    %118 = vector.shape_cast %7 : vector<8x256xf32> to vector<1x8x256xf32>
    tpu.vector_store %arg4[%c0_46, %c0_47, %c0_48], %118 {strides = array<i32>} : memref<1x17x256xf32, #tpu.memory_space<vmem>>, vector<1x8x256xf32>,
    %c0_49 = arith.constant 0 : index
    %c8 = arith.constant 8 : index
    %c0_50 = arith.constant 0 : index
    %119 = vector.load %arg4[%c0_49, %c8, %c0_50] : memref<1x17x256xf32, #tpu.memory_space<vmem>>, vector<1x8x256xf32>
    %120 = vector.shape_cast %119 : vector<1x8x256xf32> to vector<8x256xf32>
    %121 = vector.shape_cast %110 : vector<8x256xf32> to vector<1x8x256xf32>
    tpu.vector_store %arg4[%c0_49, %c8, %c0_50], %121 {strides = array<i32>} : memref<1x17x256xf32, #tpu.memory_space<vmem>>, vector<1x8x256xf32>,
    %c0_51 = arith.constant 0 : index
    %c16 = arith.constant 16 : index
    %c0_52 = arith.constant 0 : index
    %122 = vector.load %arg4[%c0_51, %c16, %c0_52] : memref<1x17x256xf32, #tpu.memory_space<vmem>>, vector<1x1x256xf32>
    %123 = vector.shape_cast %122 : vector<1x1x256xf32> to vector<1x256xf32>
    %124 = vector.shape_cast %115 : vector<1x256xf32> to vector<1x1x256xf32>
    tpu.vector_store %arg4[%c0_51, %c16, %c0_52], %124 {strides = array<i32>} : memref<1x17x256xf32, #tpu.memory_space<vmem>>, vector<1x1x256xf32>,
    %125 = arith.truncf %93 : vector<3x256xf32> to vector<3x256xbf16>
    %c0_53 = arith.constant 0 : index
    %c0_54 = arith.constant 0 : index
    %c0_55 = arith.constant 0 : index
    %126 = vector.load %arg5[%c0_53, %c0_54, %c0_55] : memref<1x3x256xbf16, #tpu.memory_space<vmem>>, vector<1x3x256xbf16>
    %127 = vector.shape_cast %126 : vector<1x3x256xbf16> to vector<3x256xbf16>
    %128 = vector.shape_cast %125 : vector<3x256xbf16> to vector<1x3x256xbf16>
    tpu.vector_store %arg5[%c0_53, %c0_54, %c0_55], %128 {strides = array<i32>} : memref<1x3x256xbf16, #tpu.memory_space<vmem>>, vector<1x3x256xbf16>,
    return
  }
  func.func @transform_0(%arg0: i32) -> (i32, i32, i32) {
    %c0_i32 = arith.constant 0 : i32
    %c0_i32_0 = arith.constant 0 : i32
    %c0_i32_1 = arith.constant 0 : i32
    return %arg0, %c0_i32, %c0_i32_0 : i32, i32, i32
  }
  func.func @transform_1(%arg0: i32) -> (i32, i32, i32) {
    %c0_i32 = arith.constant 0 : i32
    %c0_i32_0 = arith.constant 0 : i32
    %c0_i32_1 = arith.constant 0 : i32
    return %arg0, %c0_i32, %c0_i32_0 : i32, i32, i32
  }
  func.func @transform_2(%arg0: i32) -> (i32, i32, i32) {
    %c0_i32 = arith.constant 0 : i32
    %c0_i32_0 = arith.constant 0 : i32
    %c0_i32_1 = arith.constant 0 : i32
    return %arg0, %c0_i32, %c0_i32_0 : i32, i32, i32
  }
  func.func @transform_3(%arg0: i32) -> (i32, i32, i32) {
    %c0_i32 = arith.constant 0 : i32
    %c0_i32_0 = arith.constant 0 : i32
    %c0_i32_1 = arith.constant 0 : i32
    return %arg0, %c0_i32, %c0_i32_0 : i32, i32, i32
  }
  func.func @transform_4(%arg0: i32) -> (i32, i32, i32) {
    %c0_i32 = arith.constant 0 : i32
    %c0_i32_0 = arith.constant 0 : i32
    %c0_i32_1 = arith.constant 0 : i32
    return %arg0, %c0_i32, %c0_i32_0 : i32, i32, i32
  }
}

</mosaic_0001>

<llo_original>
// kernel: tpu_custom_call.1
$region0: #{tpu_custom_call.1}
  #allocation0 [shape = 'u32[]', space=smem, size = 0x4, offset = 0x4, fixed_abs, tag = 'smem constant byte address 0x4 - core index']
  #allocation1 [shape = 'u32[144,128]{1,0:T(1,128)}', space=vmem, size = 0x12000, scoped, tag = 'internal scratch']
  %s0 = inlined_call_operand.hbm [shape: f32[2,8,1024], index: 0, kind: input, shape index: {}]
  %s1 = inlined_call_operand.vmem [shape: bf16[2,1,256], index: 1, kind: input, shape index: {}]
  %s2 = inlined_call_operand.vmem [shape: bf16[2,3,256], index: 2, kind: input, shape index: {}]
  %s3 = inlined_call_operand.vmem [shape: f32[2,17,256], index: 3, kind: output, shape index: {0}]
  %s4 = inlined_call_operand.vmem [shape: bf16[2,3,256], index: 4, kind: output, shape index: {1}]
  %5 = xla_tuple %s3, %s4
  %s6 = sld [smem:[#allocation0]]
  $region57: #{tpu_custom_call.1} parent=0
    _
  %s8 = ssub.s32 1, %s6
  %s9 = scalar_select 0, %s8, %s6
  $region1: #{tpu_custom_call.1} parent=0
    #allocation2 [shape = 'u8[65536]{0}', space=vmem, size = 0x10000, scoped, tag = 'input window, operand 0']
    #allocation3 [shape = 's32[2]{0}', space=sflag, size = 0x8, scoped, tag = 'scoped memory for tpu_custom_call.1']
    %10 = vsyncpa [#allocation3], 0
    %s11 = scalar_lea.sflag [#allocation3], 1
    %12 = vsyncpa %s11, 0
    loop: start=0, step=1, limit=4
    $region2: #{tpu_custom_call.1} parent=1 // loop_pre_header
      _
    $region3: #{tpu_custom_call.1} parent=1 // loop_header
      %s14 = sphi 0, %s18
      %p15 = scmp.ge.s32.totalorder %s14, 4
      %s24 = sphi 0, %s26
      %s27 = sphi 0, %s24
      %s28 = sphi 0, %s27
      %s44 = sphi 0, %s28
      %s50 = sphi 0, %s52
      %s53 = sphi 0, %s50
      %s54 = sphi 0, %s53
      %s70 = sphi 0, %s54
      %s76 = sphi 0, %s78
      %s79 = sphi 0, %s76
      %s80 = sphi 0, %s79
      %s96 = sphi 0, %s80
      %s102 = sphi 0, %s104
      %s105 = sphi 0, %s102
      %s106 = sphi 0, %s105
      %s122 = sphi 0, %s106
      %s128 = sphi 0, %s130
      %s131 = sphi 0, %s128
      %s132 = sphi 0, %s131
      %s148 = sphi 0, %s132
    $region4: #{tpu_custom_call.1} parent=1 // loop_header_branch
      %17 = sbr.rel (%p15) target = $region8
    $region5: #{tpu_custom_call.1} parent=1 // loop_body
      %s19 = ssub.s32 %s14, 1
      %s20 = ssub.s32 %s14, 2
      %s21 = sadd.s32 %s14, 1
      %s22 = ssub.s32 %s14, %s21
      %p23 = scmp.eq.s32.totalorder %s22, 0
      %s25 = sadd.s32 %s24, 1
      %s26 = scalar_select %p23, %s24, %s25
      %p29 = pneg %p23
      %p30 = scmp.eq.s32.totalorder %s14, 1
      %p31 = por %p29, %p30
      %p32 = scmp.ne.s32.totalorder %s24, %s27
      %p33 = scmp.eq.s32.totalorder %s14, 0
      %p34 = por %p32, %p33
      %p35 = scmp.ne.s32.totalorder %s24, %s27
      %p36 = scmp.eq.s32.totalorder %s19, 1
      %p37 = por %p35, %p36
      %p38 = scmp.ne.s32.totalorder %s27, %s28
      %p39 = scmp.eq.s32.totalorder %s19, 0
      %p40 = por %p38, %p39
      %p41 = scmp.ne.s32.totalorder %s27, %s28
      %p42 = scmp.eq.s32.totalorder %s20, 1
      %p43 = por %p41, %p42
      %p45 = scmp.ne.s32.totalorder %s28, %s44
      %p46 = scmp.eq.s32.totalorder %s20, 0
      %p47 = por %p45, %p46
      %s48 = ssub.s32 %s14, %s21
      %p49 = scmp.eq.s32.totalorder %s48, 0
      %s51 = sadd.s32 %s50, 1
      %s52 = scalar_select %p49, %s50, %s51
      %p55 = pneg %p49
      %p56 = scmp.eq.s32.totalorder %s14, 1
      %p57 = por %p55, %p56
      %p58 = scmp.ne.s32.totalorder %s50, %s53
      %p59 = scmp.eq.s32.totalorder %s14, 0
      %p60 = por %p58, %p59
      %p61 = scmp.ne.s32.totalorder %s50, %s53
      %p62 = scmp.eq.s32.totalorder %s19, 1
      %p63 = por %p61, %p62
      %p64 = scmp.ne.s32.totalorder %s53, %s54
      %p65 = scmp.eq.s32.totalorder %s19, 0
      %p66 = por %p64, %p65
      %p67 = scmp.ne.s32.totalorder %s53, %s54
      %p68 = scmp.eq.s32.totalorder %s20, 1
      %p69 = por %p67, %p68
      %p71 = scmp.ne.s32.totalorder %s54, %s70
      %p72 = scmp.eq.s32.totalorder %s20, 0
      %p73 = por %p71, %p72
      %s74 = ssub.s32 %s14, %s21
      %p75 = scmp.eq.s32.totalorder %s74, 0
      %s77 = sadd.s32 %s76, 1
      %s78 = scalar_select %p75, %s76, %s77
      %p81 = pneg %p75
      %p82 = scmp.eq.s32.totalorder %s14, 1
      %p83 = por %p81, %p82
      %p84 = scmp.ne.s32.totalorder %s76, %s79
      %p85 = scmp.eq.s32.totalorder %s14, 0
      %p86 = por %p84, %p85
      %p87 = scmp.ne.s32.totalorder %s76, %s79
      %p88 = scmp.eq.s32.totalorder %s19, 1
      %p89 = por %p87, %p88
      %p90 = scmp.ne.s32.totalorder %s79, %s80
      %p91 = scmp.eq.s32.totalorder %s19, 0
      %p92 = por %p90, %p91
      %p93 = scmp.ne.s32.totalorder %s79, %s80
      %p94 = scmp.eq.s32.totalorder %s20, 1
      %p95 = por %p93, %p94
      %p97 = scmp.ne.s32.totalorder %s80, %s96
      %p98 = scmp.eq.s32.totalorder %s20, 0
      %p99 = por %p97, %p98
      %s100 = ssub.s32 %s14, %s21
      %p101 = scmp.eq.s32.totalorder %s100, 0
      %s103 = sadd.s32 %s102, 1
      %s104 = scalar_select %p101, %s102, %s103
      %p107 = pneg %p101
      %p108 = scmp.eq.s32.totalorder %s14, 1
      %p109 = por %p107, %p108
      %p110 = scmp.ne.s32.totalorder %s102, %s105
      %p111 = scmp.eq.s32.totalorder %s14, 0
      %p112 = por %p110, %p111
      %p113 = scmp.ne.s32.totalorder %s102, %s105
      %p114 = scmp.eq.s32.totalorder %s19, 1
      %p115 = por %p113, %p114
      %p116 = scmp.ne.s32.totalorder %s105, %s106
      %p117 = scmp.eq.s32.totalorder %s19, 0
      %p118 = por %p116, %p117
      %p119 = scmp.ne.s32.totalorder %s105, %s106
      %p120 = scmp.eq.s32.totalorder %s20, 1
      %p121 = por %p119, %p120
      %p123 = scmp.ne.s32.totalorder %s106, %s122
      %p124 = scmp.eq.s32.totalorder %s20, 0
      %p125 = por %p123, %p124
      %s126 = ssub.s32 %s14, %s21
      %p127 = scmp.eq.s32.totalorder %s126, 0
      %s129 = sadd.s32 %s128, 1
      %s130 = scalar_select %p127, %s128, %s129
      %p133 = pneg %p127
      %p134 = scmp.eq.s32.totalorder %s14, 1
      %p135 = por %p133, %p134
      %p136 = scmp.ne.s32.totalorder %s128, %s131
      %p137 = scmp.eq.s32.totalorder %s14, 0
      %p138 = por %p136, %p137
      %p139 = scmp.ne.s32.totalorder %s128, %s131
      %p140 = scmp.eq.s32.totalorder %s19, 1
      %p141 = por %p139, %p140
      %p142 = scmp.ne.s32.totalorder %s131, %s132
      %p143 = scmp.eq.s32.totalorder %s19, 0
      %p144 = por %p142, %p143
      %p145 = scmp.ne.s32.totalorder %s131, %s132
      %p146 = scmp.eq.s32.totalorder %s20, 1
      %p147 = por %p145, %p146
      %p149 = scmp.ne.s32.totalorder %s132, %s148
      %p150 = scmp.eq.s32.totalorder %s20, 0
      %p151 = por %p149, %p150
      %p152 = scmp.le.s32.totalorder 1, %s14
      %p153 = scmp.lt.s32.totalorder %s14, 3
      %p154 = pnand %p152, %p153
      %p155 = pneg %p154
      // Predicated region
      $region9: #{tpu_custom_call.1} parent=5 // pred_check
        _
      $region10: #{tpu_custom_call.1} parent=5 // pred_check_branch
        %157 = sbr.rel (%p154) target = $region12
      $region11: #{tpu_custom_call.1} parent=5 // pred_region
        %s158 = ssub.s32 %s14, 1
      $region12: #{tpu_custom_call.1} parent=5 // pred_fallthru
        _
      %p159 = scmp.lt.s32.totalorder %s14, 2
      // Predicated region
      $region13: #{tpu_custom_call.1} parent=5 // pred_check
        %p160 = pneg %p159
      $region14: #{tpu_custom_call.1} parent=5 // pred_check_branch
        %162 = sbr.rel (%p160) target = $region16
      $region15: #{tpu_custom_call.1} parent=5 // pred_region
        // Predicated region
        $region17: #{tpu_custom_call.1} parent=15 // pred_check
          %p163 = pneg %p34
        $region18: #{tpu_custom_call.1} parent=15 // pred_check_branch
          %165 = sbr.rel (%p163) target = $region20
        $region19: #{tpu_custom_call.1} parent=15 // pred_region
          %s166 = sand.u32 %s24, 1
          %s167 = scalar_lea.sflag [#allocation3], %s166
          %s168 = sand.u32 %s24, 1
          %s169 = smul.addr %s168, 64
          %s170 = scalar_lea.vmem [#allocation2], %s169
          %s172 = ssub.s32 1024, 1024
          %173 = vsyncadd %s167, %s172
          %s174 = smul.addr %s14, 8
          %s175 = smul.addr %s174, 128
          %s176 = scalar_lea.hbm %s0, %s175
          %s178 = sshll.u32 %s170, 4
          %s179 = int_to_ptr.vmem [resolvable:$true] %s178
          %181 = dma.hbm_to_vmem [thread:$0]  %s176, 1024, %s179, %s167
        $region20: #{tpu_custom_call.1} parent=15 // pred_fallthru
          _
        // Predicated region
        $region21: #{tpu_custom_call.1} parent=15 // pred_check
          %p182 = pneg %p60
        $region22: #{tpu_custom_call.1} parent=15 // pred_check_branch
          %184 = sbr.rel (%p182) target = $region24
        $region23: #{tpu_custom_call.1} parent=15 // pred_region
          %p185 = scmp.lt.s32.totalorder %s14, 1
          %s186 = scalar_select %p185, %s14, 1
          %s187 = smul.addr %s186, 2
          %s188 = scalar_lea.vmem %s1, %s187
        $region24: #{tpu_custom_call.1} parent=15 // pred_fallthru
          _
        // Predicated region
        $region25: #{tpu_custom_call.1} parent=15 // pred_check
          %p189 = pneg %p86
        $region26: #{tpu_custom_call.1} parent=15 // pred_check_branch
          %191 = sbr.rel (%p189) target = $region28
        $region27: #{tpu_custom_call.1} parent=15 // pred_region
          %p192 = scmp.lt.s32.totalorder %s14, 1
          %s193 = scalar_select %p192, %s14, 1
          %s194 = smul.addr %s193, 2
          %s195 = smul.addr %s194, 2
          %s196 = scalar_lea.vmem %s2, %s195
        $region28: #{tpu_custom_call.1} parent=15 // pred_fallthru
          _
      $region16: #{tpu_custom_call.1} parent=5 // pred_fallthru
        _
      %p197 = scmp.le.s32.totalorder 1, %s14
      %p198 = scmp.lt.s32.totalorder %s14, 3
      %p199 = pnand %p197, %p198
      %p200 = pneg %p199
      // Predicated region
      $region29: #{tpu_custom_call.1} parent=5 // pred_check
        _
      $region30: #{tpu_custom_call.1} parent=5 // pred_check_branch
        %202 = sbr.rel (%p199) target = $region32
      $region31: #{tpu_custom_call.1} parent=5 // pred_region
        %s203 = ssub.s32 %s14, 1
        %s204 = sand.u32 %s27, 1
        %s205 = scalar_lea.sflag [#allocation3], %s204
        %s206 = sand.u32 %s27, 1
        %s207 = smul.addr %s206, 64
        %s208 = scalar_lea.vmem [#allocation2], %s207
        // Predicated region
        $region33: #{tpu_custom_call.1} parent=31 // pred_check
          %p209 = pneg %p40
        $region34: #{tpu_custom_call.1} parent=31 // pred_check_branch
          %211 = sbr.rel (%p209) target = $region36
        $region35: #{tpu_custom_call.1} parent=31 // pred_region
          %212 = dma.done %s205, 1024
        $region36: #{tpu_custom_call.1} parent=31 // pred_fallthru
          _
        %s213 = sand.u32 %s27, 1
        %s214 = scalar_lea.sflag [#allocation3], %s213
        %s215 = sand.u32 %s27, 1
        %s216 = smul.addr %s215, 64
        %s217 = scalar_lea.vmem [#allocation2], %s216
        %p218 = pneg %p40
        %p219 = pneg %p37
        %p220 = scmp.lt.s32.totalorder %s19, 1
        %s221 = scalar_select %p220, %s19, 1
        %s222 = smul.addr %s221, 2
        %s223 = scalar_lea.vmem %s1, %s222
        %p224 = pneg %p66
        %p225 = pneg %p63
        %p226 = scmp.lt.s32.totalorder %s19, 1
        %s227 = scalar_select %p226, %s19, 1
        %s228 = smul.addr %s227, 2
        %s229 = smul.addr %s228, 2
        %s230 = scalar_lea.vmem %s2, %s229
        %p231 = pneg %p92
        %p232 = pneg %p89
        %p233 = pneg %p118
        %p234 = pneg %p115
        %p235 = scmp.lt.s32.totalorder %s19, 1
        %s236 = scalar_select %p235, %s19, 1
        %s237 = smul.addr %s236, 6
        %s238 = smul.addr %s237, 8
        %s239 = scalar_lea.vmem %s3, %s238
        %p240 = pneg %p144
        %p241 = pneg %p141
        %p242 = scmp.lt.s32.totalorder %s19, 1
        %s243 = scalar_select %p242, %s19, 1
        %s244 = smul.addr %s243, 2
        %s245 = smul.addr %s244, 2
        %s246 = scalar_lea.vmem %s4, %s245
        %p247 = scmp.lt.s32.totalorder %s19, 1
        %s248 = scalar_select %p247, %s19, 1
        %s249 = smul.addr %s248, 2
        %s250 = scalar_lea.vmem %s1, %s249
        %p251 = scmp.lt.s32.totalorder %s19, 1
        %s252 = scalar_select %p251, %s19, 1
        %s253 = smul.addr %s252, 2
        %s254 = smul.addr %s253, 2
        %s255 = scalar_lea.vmem %s2, %s254
        %p256 = scmp.lt.s32.totalorder %s19, 1
        %s257 = scalar_select %p256, %s19, 1
        %s258 = smul.addr %s257, 6
        %s259 = smul.addr %s258, 8
        %s260 = scalar_lea.vmem %s3, %s259
        %p261 = scmp.lt.s32.totalorder %s19, 1
        %s262 = scalar_select %p261, %s19, 1
        %s263 = smul.addr %s262, 2
        %s264 = smul.addr %s263, 2
        %s265 = scalar_lea.vmem %s4, %s264
        %v266 = vld [vmem:[%s250] sm:$0x3]
        %v267 = vunpack.c.l.bf16 %v266
        %v268 = vld [vmem:[%s255] sm:$0xf]
        %v269 = vunpack.c.l.bf16 %v268
        %v270 = vld [vmem:[%s208] sm:$0xff]
        %v271 = vld [vmem:[%s208 + $0x8] sm:$0xff]
        %v272 = vld [vmem:[%s208 + $0x10] sm:$0xff]
        %v273 = vld [vmem:[%s208 + $0x18] sm:$0xff]
        %v274 = vmul.f32 %v270, %v272
        %v275 = vmul.f32 %v271, %v273
        %v276 = vrot.slane %v274, 4
        %v277 = vadd.f32 %v274, %v276
        %v278 = vrot.slane %v277, 2
        %v279 = vadd.f32 %v277, %v278
        %v280 = vrot.slane %v279, 1
        %v281 = vadd.f32 %v279, %v280
        %v282 = vrot.slane %v275, 4
        %v283 = vadd.f32 %v275, %v282
        %v284 = vrot.slane %v283, 2
        %v285 = vadd.f32 %v283, %v284
        %v286 = vrot.slane %v285, 1
        %v287 = vadd.f32 %v285, %v286
        %v290 = vunpack.c.l.s4 1983009808
        %v291 = vunpack.c.0.s8 %v290
        %v292 = vlaneseq
        %v293 = vshrl.u32 %v292, 7
        %v294 = vsub.s32 %v291, %v293
        %v295 = vrot.slane %v269, %v294
        %v297 = vmul.f32 %v267, %v295
        %v299 = vlaneseq
        %v300 = vshrl.u32 %v299, 7
        %v301 = vsub.s32 0, %v300
        %v302 = vrot.slane %v297, %v301
        %v303 = vlaneseq
        %v304 = vshrl.u32 %v303, 7
        %v305 = vsub.s32 2, %v304
        %v306 = vrot.slane %v297, %v305
        %vm309 = vcmask 1040384
        %v310 = vsel %vm309, %v302, 0.0
        %v311 = vsel %vm309, %v306, 0.0
        %v312 = vadd.f32 %v310, %v311
        %313 = vadd.xlane.f32.xlu0 %v312
        %v314 = vpop.xlane.xlu0 %313
        %v317 = vcombine.low %v281, %v287
        %v319 = vunpack.c.l.s4 1983009808
        %v320 = vunpack.c.0.s8 %v319
        %v321 = vlaneseq
        %v322 = vshrl.u32 %v321, 7
        %v323 = vsub.s32 %v320, %v322
        %v324 = vrot.slane %v317, %v323
        %v326 = vmul.f32 %v297, %v324
        %v328 = vlaneseq
        %v329 = vshrl.u32 %v328, 7
        %v330 = vsub.s32 0, %v329
        %v331 = vrot.slane %v326, %v330
        %v332 = vlaneseq
        %v333 = vshrl.u32 %v332, 7
        %v334 = vsub.s32 2, %v333
        %v335 = vrot.slane %v326, %v334
        %v338 = vsel %vm309, %v331, 0.0
        %v339 = vsel %vm309, %v335, 0.0
        %v340 = vadd.f32 %v338, %v339
        %341 = vadd.xlane.f32.xlu0 %v340
        %v342 = vpop.xlane.xlu0 %341
        %vm343 = vcmp.lt.f32.partialorder %v314, 0.0001
        %v344 = vsel %vm343, 1, 0
        %v345 = vcvt.s32.f32 %v344
        %v346 = vadd.f32 %v314, %v345
        %v347 = vmul.f32 %v346, 8.0
        %v348 = vrcp.pop %v347
        %v349 = vmul.f32 %v342, %v348
        %v350 = vsel %vm343, 0.0, %v349
        %v351 = vld [vmem:[%s208 + $0x20] sm:$0xff]
        %v352 = vld [vmem:[%s208 + $0x28] sm:$0xff]
        %v353 = vmul.f32 %v270, %v351
        %v354 = vmul.f32 %v271, %v352
        %v355 = vrot.slane %v353, 4
        %v356 = vadd.f32 %v353, %v355
        %v357 = vrot.slane %v356, 2
        %v358 = vadd.f32 %v356, %v357
        %v359 = vrot.slane %v358, 1
        %v360 = vadd.f32 %v358, %v359
        %v361 = vrot.slane %v354, 4
        %v362 = vadd.f32 %v354, %v361
        %v363 = vrot.slane %v362, 2
        %v364 = vadd.f32 %v362, %v363
        %v365 = vrot.slane %v364, 1
        %v366 = vadd.f32 %v364, %v365
        %v367 = vrot.slane %v295, 7
        %v368 = vrot.slane %v367, 2
        %v370 = vmul.f32 %v267, %v368
        %v372 = vlaneseq
        %v373 = vshrl.u32 %v372, 7
        %v374 = vsub.s32 0, %v373
        %v375 = vrot.slane %v370, %v374
        %v376 = vlaneseq
        %v377 = vshrl.u32 %v376, 7
        %v378 = vsub.s32 2, %v377
        %v379 = vrot.slane %v370, %v378
        %v382 = vsel %vm309, %v375, 0.0
        %v383 = vsel %vm309, %v379, 0.0
        %v384 = vadd.f32 %v382, %v383
        %385 = vadd.xlane.f32.xlu0 %v384
        %v386 = vpop.xlane.xlu0 %385
        %v389 = vcombine.low %v360, %v366
        %v391 = vunpack.c.l.s4 1983009808
        %v392 = vunpack.c.0.s8 %v391
        %v393 = vlaneseq
        %v394 = vshrl.u32 %v393, 7
        %v395 = vsub.s32 %v392, %v394
        %v396 = vrot.slane %v389, %v395
        %v398 = vmul.f32 %v370, %v396
        %v400 = vlaneseq
        %v401 = vshrl.u32 %v400, 7
        %v402 = vsub.s32 0, %v401
        %v403 = vrot.slane %v398, %v402
        %v404 = vlaneseq
        %v405 = vshrl.u32 %v404, 7
        %v406 = vsub.s32 2, %v405
        %v407 = vrot.slane %v398, %v406
        %v410 = vsel %vm309, %v403, 0.0
        %v411 = vsel %vm309, %v407, 0.0
        %v412 = vadd.f32 %v410, %v411
        %413 = vadd.xlane.f32.xlu0 %v412
        %v414 = vpop.xlane.xlu0 %413
        %vm415 = vcmp.lt.f32.partialorder %v386, 0.0001
        %v416 = vsel %vm415, 1, 0
        %v417 = vcvt.s32.f32 %v416
        %v418 = vadd.f32 %v386, %v417
        %v419 = vmul.f32 %v418, 8.0
        %v420 = vrcp.pop %v419
        %v421 = vmul.f32 %v414, %v420
        %v422 = vsel %vm415, 0.0, %v421
        %v423 = vld [vmem:[%s208 + $0x30] sm:$0xff]
        %v424 = vld [vmem:[%s208 + $0x38] sm:$0xff]
        %v425 = vmul.f32 %v270, %v423
        %v426 = vmul.f32 %v271, %v424
        %v427 = vrot.slane %v425, 4
        %v428 = vadd.f32 %v425, %v427
        %v429 = vrot.slane %v428, 2
        %v430 = vadd.f32 %v428, %v429
        %v431 = vrot.slane %v430, 1
        %v432 = vadd.f32 %v430, %v431
        %v433 = vrot.slane %v426, 4
        %v434 = vadd.f32 %v426, %v433
        %v435 = vrot.slane %v434, 2
        %v436 = vadd.f32 %v434, %v435
        %v437 = vrot.slane %v436, 1
        %v438 = vadd.f32 %v436, %v437
        %v439 = vcombine.high %v295, %v295
        %v441 = vmul.f32 %v267, %v439
        %v443 = vlaneseq
        %v444 = vshrl.u32 %v443, 7
        %v445 = vsub.s32 0, %v444
        %v446 = vrot.slane %v441, %v445
        %v447 = vlaneseq
        %v448 = vshrl.u32 %v447, 7
        %v449 = vsub.s32 2, %v448
        %v450 = vrot.slane %v441, %v449
        %v453 = vsel %vm309, %v446, 0.0
        %v454 = vsel %vm309, %v450, 0.0
        %v455 = vadd.f32 %v453, %v454
        %456 = vadd.xlane.f32.xlu0 %v455
        %v457 = vpop.xlane.xlu0 %456
        %v460 = vcombine.low %v432, %v438
        %v462 = vunpack.c.l.s4 1983009808
        %v463 = vunpack.c.0.s8 %v462
        %v464 = vlaneseq
        %v465 = vshrl.u32 %v464, 7
        %v466 = vsub.s32 %v463, %v465
        %v467 = vrot.slane %v460, %v466
        %v469 = vmul.f32 %v441, %v467
        %v471 = vlaneseq
        %v472 = vshrl.u32 %v471, 7
        %v473 = vsub.s32 0, %v472
        %v474 = vrot.slane %v469, %v473
        %v475 = vlaneseq
        %v476 = vshrl.u32 %v475, 7
        %v477 = vsub.s32 2, %v476
        %v478 = vrot.slane %v469, %v477
        %v481 = vsel %vm309, %v474, 0.0
        %v482 = vsel %vm309, %v478, 0.0
        %v483 = vadd.f32 %v481, %v482
        %484 = vadd.xlane.f32.xlu0 %v483
        %v485 = vpop.xlane.xlu0 %484
        %vm486 = vcmp.lt.f32.partialorder %v457, 0.0001
        %v487 = vsel %vm486, 1, 0
        %v488 = vcvt.s32.f32 %v487
        %v489 = vadd.f32 %v457, %v488
        %v490 = vmul.f32 %v489, 8.0
        %v491 = vrcp.pop %v490
        %v492 = vmul.f32 %v485, %v491
        %v493 = vsel %vm486, 0.0, %v492
        %v495 = vrot.slane %v422, 7
        %v498 = vrot.slane %v493, 6
        %v500 = vsel %vm309, %v350, %v495
        %vm501 = vcmask 1041408
        %v502 = vsel %vm501, %v500, %v498
        %504 = vset.pattern.permute.xlu0 0
        %505 = vperm.xlu0 %504, %v502
        %v506 = vpop.permute.xlu0 %505
        %v508 = vcombine.high %v269, %v269
        %v510 = vmul.f32 %v506, %v269
        %v511 = vmul.f32 %v506, %v508
        %vm512 = vcmask 1042432
        %v513 = vsel %vm512, %v510, -inf
        %v514 = vrot.slane %v513, 4
        %v515 = vmax.f32 %v513, %v514
        %v516 = vrot.slane %v515, 2
        %v517 = vmax.f32 %v515, %v516
        %v518 = vrot.slane %v517, 1
        %v519 = vmax.f32 %v517, %v518
        %v520 = vsel %vm512, %v511, -inf
        %v521 = vrot.slane %v520, 4
        %v522 = vmax.f32 %v520, %v521
        %v523 = vrot.slane %v522, 2
        %v524 = vmax.f32 %v522, %v523
        %v525 = vrot.slane %v524, 1
        %v526 = vmax.f32 %v524, %v525
        %v527 = vsub.f32 %v510, %v519
        %v528 = vsub.f32 %v511, %v526
        %v529 = vmul.f32 %v527, 1.442695
        %v530 = vpow.pop %v529
        %v531 = vmul.f32 %v528, 1.442695
        %v532 = vpow.pop %v531
        %v533 = vmul.f32 %v530, %v269
        %v534 = vmul.f32 %v532, %v508
        %v535 = vsel %vm512, %v533, 0.0
        %v536 = vrot.slane %v535, 4
        %v537 = vadd.f32 %v535, %v536
        %v538 = vrot.slane %v537, 2
        %v539 = vadd.f32 %v537, %v538
        %v540 = vrot.slane %v539, 1
        %v541 = vadd.f32 %v539, %v540
        %v542 = vsel %vm512, %v534, 0.0
        %v543 = vrot.slane %v542, 4
        %v544 = vadd.f32 %v542, %v543
        %v545 = vrot.slane %v544, 2
        %v546 = vadd.f32 %v544, %v545
        %v547 = vrot.slane %v546, 1
        %v548 = vadd.f32 %v546, %v547
        %vm549 = vcmp.lt.f32.partialorder %v541, 0.0001
        %vm550 = vcmp.lt.f32.partialorder %v548, 0.0001
        %v551 = vsel %vm549, 1, 0
        %v552 = vsel %vm550, 1, 0
        %v553 = vcvt.s32.f32 %v551
        %v554 = vcvt.s32.f32 %v552
        %v555 = vadd.f32 %v541, %v553
        %v556 = vadd.f32 %v548, %v554
        %v557 = vrcp.pop %v555
        %v558 = vmul.f32 1.0, %v557
        %v559 = vrcp.pop %v556
        %v560 = vmul.f32 1.0, %v559
        %v561 = vmul.f32 %v533, %v558
        %v562 = vmul.f32 %v534, %v560
        %v563 = vlaneseq
        %v564 = vshrl.u32 %v563, 7
        %v565 = vsub.s32 0, %v564
        %v566 = vrot.slane %v561, %v565
        %v567 = vlaneseq
        %v568 = vshrl.u32 %v567, 7
        %v569 = vsub.s32 0, %v568
        %v570 = vrot.slane %v562, %v569
        %v571 = vmul.f32 %v272, %v566
        %v572 = vmul.f32 %v273, %v570
        %v573 = vlaneseq
        %v574 = vshrl.u32 %v573, 7
        %v575 = vsub.s32 1, %v574
        %v576 = vrot.slane %v561, %v575
        %v577 = vlaneseq
        %v578 = vshrl.u32 %v577, 7
        %v579 = vsub.s32 1, %v578
        %v580 = vrot.slane %v562, %v579
        %v581 = vmul.f32 %v351, %v576
        %v582 = vmul.f32 %v352, %v580
        %v583 = vadd.f32 %v571, %v581
        %v584 = vadd.f32 %v572, %v582
        %v585 = vlaneseq
        %v586 = vshrl.u32 %v585, 7
        %v587 = vsub.s32 2, %v586
        %v588 = vrot.slane %v561, %v587
        %v589 = vlaneseq
        %v590 = vshrl.u32 %v589, 7
        %v591 = vsub.s32 2, %v590
        %v592 = vrot.slane %v562, %v591
        %v593 = vmul.f32 %v423, %v588
        %v594 = vmul.f32 %v424, %v592
        %v595 = vadd.f32 %v583, %v593
        %v596 = vadd.f32 %v584, %v594
        %v597 = vmul.f32 %v561, %v269
        %v598 = vmul.f32 %v562, %v508
        %v599 = vsel %vm512, %v597, 0.0
        %v600 = vrot.slane %v599, 4
        %v601 = vadd.f32 %v599, %v600
        %v602 = vrot.slane %v601, 2
        %v603 = vadd.f32 %v601, %v602
        %v604 = vrot.slane %v603, 1
        %v605 = vadd.f32 %v603, %v604
        %v606 = vsel %vm512, %v598, 0.0
        %v607 = vrot.slane %v606, 4
        %v608 = vadd.f32 %v606, %v607
        %v609 = vrot.slane %v608, 2
        %v610 = vadd.f32 %v608, %v609
        %v611 = vrot.slane %v610, 1
        %v612 = vadd.f32 %v610, %v611
        %v613 = vsub.f32 1.0, %v605
        %v614 = vsub.f32 1.0, %v612
        %615 = vst [vmem:[%s260] sm:$0xff] %v270
        %616 = vst [vmem:[%s260 + $0x8] sm:$0xff] %v271
        %617 = vst [vmem:[%s260 + $0x10] sm:$0xff] %v595
        %618 = vst [vmem:[%s260 + $0x18] sm:$0xff] %v596
        %v621 = vcombine.low %v613, %v614
        %v623 = vunpack.c.l.s4 1966171168
        %v624 = vunpack.c.0.s8 %v623
        %v625 = vlaneseq
        %v626 = vshrl.u32 %v625, 7
        %v627 = vsub.s32 %v624, %v626
        %v628 = vrot.slane %v621, %v627
        %v630 = vunpack.c.l.s4 1966171168
        %v631 = vunpack.c.0.s8 %v630
        %v632 = vlaneseq
        %v633 = vshrl.u32 %v632, 7
        %v634 = vsub.s32 %v631, %v633
        %v635 = vrot.slane %v628, %v634
        %v637 = vlaneseq
        %vm638 = vcmp.ge.s32.totalorder %v637, 0
        %vm639 = vcmp.lt.s32.totalorder %v637, 256
        %vm640 = vmand %vm638, %vm639
        %s641 = scalar_lea.vmem %s260, 32
        %642 = vst.msk [vmem:[%s641] ss:$8 sm:$0x3] %vm640, %v635
        %643 = vst.msk [vmem:[%s641] ss:$8 sm:$0x0] %vm640, %v635
        %v644 = vpack.c.bf16 %v561, %v561
        %v645 = vpack.c.bf16 %v562, %v562
        %v648 = vcombine.low %v644, %v645
        %v650 = vunpack.c.l.s4 1983009808
        %v651 = vunpack.c.0.s8 %v650
        %v652 = vlaneseq
        %v653 = vshrl.u32 %v652, 7
        %v654 = vsub.s32 %v651, %v653
        %v655 = vrot.slane %v648, %v654
        %vm657 = vcmask 1041408
        %vm658 = vsmask.f32 1280
        %vm659 = vmand %vm657, %vm658
        %vm660 = vcmask 1043458
        %vm661 = vsmask.f32 3328
        %vm662 = vmand %vm660, %vm661
        %vm663 = vmor %vm662, %vm659
        %v664 = vld [vmem:[%s265] sm:$0xf]
        %v665 = vsel %vm663, %v655, %v664
        %666 = vst [vmem:[%s265] sm:$0xf] %v665
        %p667 = scmp.lt.s32.totalorder %s19, 1
        %s668 = scalar_select %p667, %s19, 1
        %s669 = smul.addr %s668, 6
        %s670 = smul.addr %s669, 8
        %s671 = scalar_lea.vmem %s3, %s670
        %p672 = scmp.lt.s32.totalorder %s19, 1
        %s673 = scalar_select %p672, %s19, 1
        %s674 = smul.addr %s673, 2
        %s675 = smul.addr %s674, 2
        %s676 = scalar_lea.vmem %s4, %s675
        // Predicated region
        $region37: #{tpu_custom_call.1} parent=31 // pred_check
          %p677 = pneg %p115
        $region38: #{tpu_custom_call.1} parent=31 // pred_check_branch
          %679 = sbr.rel (%p677) target = $region40
        $region39: #{tpu_custom_call.1} parent=31 // pred_region
          _
        $region40: #{tpu_custom_call.1} parent=31 // pred_fallthru
          _
        // Predicated region
        $region41: #{tpu_custom_call.1} parent=31 // pred_check
          %p680 = pneg %p141
        $region42: #{tpu_custom_call.1} parent=31 // pred_check_branch
          %682 = sbr.rel (%p680) target = $region44
        $region43: #{tpu_custom_call.1} parent=31 // pred_region
          _
        $region44: #{tpu_custom_call.1} parent=31 // pred_fallthru
          _
      $region32: #{tpu_custom_call.1} parent=5 // pred_fallthru
        _
      %p683 = scmp.le.s32.totalorder 2, %s14
      // Predicated region
      $region45: #{tpu_custom_call.1} parent=5 // pred_check
        %p684 = pneg %p683
      $region46: #{tpu_custom_call.1} parent=5 // pred_check_branch
        %686 = sbr.rel (%p684) target = $region48
      $region47: #{tpu_custom_call.1} parent=5 // pred_region
        %s687 = ssub.s32 %s14, 2
        // Predicated region
        $region49: #{tpu_custom_call.1} parent=47 // pred_check
          %p688 = pneg %p121
        $region50: #{tpu_custom_call.1} parent=47 // pred_check_branch
          %690 = sbr.rel (%p688) target = $region52
        $region51: #{tpu_custom_call.1} parent=47 // pred_region
          %p691 = scmp.lt.s32.totalorder %s20, 1
          %s692 = scalar_select %p691, %s20, 1
          %s693 = smul.addr %s692, 6
          %s694 = smul.addr %s693, 8
          %s695 = scalar_lea.vmem %s3, %s694
        $region52: #{tpu_custom_call.1} parent=47 // pred_fallthru
          _
        // Predicated region
        $region53: #{tpu_custom_call.1} parent=47 // pred_check
          %p696 = pneg %p147
        $region54: #{tpu_custom_call.1} parent=47 // pred_check_branch
          %698 = sbr.rel (%p696) target = $region56
        $region55: #{tpu_custom_call.1} parent=47 // pred_region
          %p699 = scmp.lt.s32.totalorder %s20, 1
          %s700 = scalar_select %p699, %s20, 1
          %s701 = smul.addr %s700, 2
          %s702 = smul.addr %s701, 2
          %s703 = scalar_lea.vmem %s4, %s702
        $region56: #{tpu_custom_call.1} parent=47 // pred_fallthru
          _
      $region48: #{tpu_custom_call.1} parent=5 // pred_fallthru
        _
    $region6: #{tpu_custom_call.1} parent=1 // loop_footer
      %s18 = sadd.s32 1, %s14
    $region7: #{tpu_custom_call.1} parent=1 // loop_footer_branch
      %13 = sbr.rel target = $region3
    $region8: #{tpu_custom_call.1} parent=1 // loop_exit
      _
    %704 = vsyncpa [#allocation3], 1
    %s705 = scalar_lea.sflag [#allocation3], 1
    %706 = vsyncpa %s705, 1

</llo_original>
